<compile_context>
chip_gen: v5e
topology: v5e:2x2
jax: 0.10.0
libtpu: 0.0.40
codegen_flags: <defaults>
</compile_context>

<pallas_src>
import math
import functools

import jax
import jax.numpy as jnp
from jax.experimental import pallas as pl
from jax.experimental.pallas import tpu as pltpu

# Module hyper-parameters (from __init__ defaults).
MIN_DEPTH = 0.001
MAX_DEPTH = 10.0
DEPTH_BINS = 64
ALPHA = 1.0
ZETA = 1.0 - MIN_DEPTH
BETA = MAX_DEPTH + ZETA
IGNORE_INDEX = -(DEPTH_BINS + 1)
LOG_BETA_OVER_ALPHA = math.log(BETA / ALPHA)

MAX_TL = 2048  # max spatial positions per grid step (multiple of 128)


def _nll_kernel(x_ref, d_ref, m_ref, psum_ref, pcnt_ref, *, c, tl):
    """One grid step: (C, TL) logits + (1, TL) depth/mask -> partial sum/count.

    x_ref:    (1, C, TL)  logits (f32 or bf16), bins on sublanes, space on lanes
    d_ref:    (1, 1, TL)  raw depth (f32)
    m_ref:    (1, 1, TL)  mask (f32, 1.0 = keep)
    psum_ref: (1, 1, 128) partial loss sum   (written to lane 0)
    pcnt_ref: (1, 1, 128) partial valid count (written to lane 0)
    """
    x = x_ref[0].astype(jnp.float32)     # (C, TL)
    d = d_ref[0]                          # (1, TL)
    msk = m_ref[0]                        # (1, TL)

    # quantize_depth: round(log(d/alpha)/log(beta/alpha) * (bins-1))
    # (same expression ordering as the reference to keep rounding identical)
    q = jnp.log(d / ALPHA) / LOG_BETA_OVER_ALPHA * (DEPTH_BINS - 1)
    t = jnp.round(q).astype(jnp.int32)                      # (1, TL)
    # target = target*mask + (1-mask)*ignore_index
    t = jnp.where(msk > 0.5, t, IGNORE_INDEX)
    valid = t != IGNORE_INDEX                               # (1, TL)
    # TODO(synk): bins outside [0, depth_bins-1] (depth outside [min,max]) are
    # not clamped -- torch's F.cross_entropy would raise there; such positions
    # here contribute lse with picked=0.

    # log-softmax cross entropy per spatial position (reduce over bin axis 0:
    # VPU adds across 8 sublane-vregs + one 8-deep sublane reduce).
    mx = jnp.max(x, axis=0, keepdims=True)                  # (1, TL)
    lse = mx + jnp.log(jnp.sum(jnp.exp(x - mx), axis=0, keepdims=True))
    bins = jax.lax.broadcasted_iota(jnp.int32, (c, tl), 0)  # (C, TL)
    picked = jnp.sum(jnp.where(bins == t, x, 0.0), axis=0, keepdims=True)
    per = jnp.where(valid, lse - picked, 0.0)               # (1, TL)

    s = jnp.sum(per)
    cnt = jnp.sum(valid.astype(jnp.float32))

    lane = jax.lax.broadcasted_iota(jnp.int32, (1, 1, 128), 2)
    psum_ref[...] = jnp.where(lane == 0, s, 0.0)
    pcnt_ref[...] = jnp.where(lane == 0, cnt, 0.0)


def _bilinear_align_corners(x, out_hw):
    """Plain-JAX glue: bilinear resize with align_corners=True on NCHW."""
    n, c, h, w = x.shape
    out_h, out_w = out_hw
    ys = jnp.linspace(0.0, h - 1, out_h) if out_h > 1 else jnp.zeros((out_h,))
    xs = jnp.linspace(0.0, w - 1, out_w) if out_w > 1 else jnp.zeros((out_w,))
    y0 = jnp.floor(ys).astype(jnp.int32)
    y1 = jnp.minimum(y0 + 1, h - 1)
    wy = (ys - y0)[None, None, :, None]
    x0 = jnp.floor(xs).astype(jnp.int32)
    x1 = jnp.minimum(x0 + 1, w - 1)
    wx = (xs - x0)[None, None, None, :]
    rows = x[:, :, y0, :] * (1.0 - wy) + x[:, :, y1, :] * wy
    return rows[:, :, :, x0] * (1.0 - wx) + rows[:, :, :, x1] * wx


@functools.partial(jax.jit, static_argnames=("interpolate",))
def discrete_nll_loss(logits, target_depth, mask=None, interpolate=True):
    """Forward pass of DiscreteNLLLoss.

    logits: (N, depth_bins, H, W) float32/bfloat16 ('metric_depth' prediction)
    target_depth: (N, H, W) or (N, 1, H, W) float raw depth
    mask: optional (N, H, W) / (N, 1, H, W) boolean-ish mask
    """
    # TODO(synk): the bilinear-interpolation branch (mismatched spatial shapes)
    # is handled in plain-JAX glue, not inside the Pallas kernel.
    if logits.shape[-1] != target_depth.shape[-1] and interpolate:
        logits = _bilinear_align_corners(logits, target_depth.shape[-2:])
    if target_depth.ndim == 3:
        target_depth = target_depth[:, None]

    n, c, h, w = logits.shape
    assert c == DEPTH_BINS
    hw = h * w

    if logits.dtype != jnp.bfloat16:
        logits = logits.astype(jnp.float32)   # bf16 kept as-is (DMA savings)

    if mask is None:
        mask = jnp.ones((n, 1, h, w), dtype=jnp.float32)
    else:
        if mask.ndim == 3:
            mask = mask[:, None]
        mask = mask.astype(jnp.float32)
    # NOTE: torch also does input = input*mask + (1-mask)*ignore_index; that is
    # numerically redundant (masked positions are excluded via the target), so
    # we skip it and save a full HBM pass over the logits.

    # Free reshapes (contiguous collapse of the spatial dims, no transpose).
    x = logits.reshape(n, c, hw)
    d = target_depth.astype(jnp.float32).reshape(n, 1, hw)
    m = mask.reshape(n, 1, hw)

    # Lane-align the spatial extent (copy only when H*W is not a multiple of
    # 128, which is rare for real image resolutions).
    hw_pad = pl.cdiv(hw, 128) * 128
    if hw_pad != hw:
        pad = hw_pad - hw
        x = jnp.pad(x, ((0, 0), (0, 0), (0, pad)))
        d = jnp.pad(d, ((0, 0), (0, 0), (0, pad)), constant_values=1.0)
        m = jnp.pad(m, ((0, 0), (0, 0), (0, pad)), constant_values=0.0)

    # Largest lane-aligned tile <= MAX_TL that divides hw_pad (128 always does).
    tl = 128
    for cand in range(MAX_TL, 127, -128):
        if hw_pad % cand == 0:
            tl = cand
            break
    gj = hw_pad // tl

    kernel = functools.partial(_nll_kernel, c=c, tl=tl)
    psum, pcnt = pl.pallas_call(
        kernel,
        out_shape=(
            jax.ShapeDtypeStruct((n, 1, gj * 128), jnp.float32),
            jax.ShapeDtypeStruct((n, 1, gj * 128), jnp.float32),
        ),
        grid_spec=pltpu.PrefetchScalarGridSpec(
            num_scalar_prefetch=0,
            grid=(n, gj),
            in_specs=[
                pl.BlockSpec((1, c, tl), lambda i, j: (i, 0, j)),
                pl.BlockSpec((1, 1, tl), lambda i, j: (i, 0, j)),
                pl.BlockSpec((1, 1, tl), lambda i, j: (i, 0, j)),
            ],
            out_specs=[
                pl.BlockSpec((1, 1, 128), lambda i, j: (i, 0, j)),
                pl.BlockSpec((1, 1, 128), lambda i, j: (i, 0, j)),
            ],
        ),
        compiler_params=pltpu.CompilerParams(
            dimension_semantics=("parallel", "parallel")),
    )(x, d, m)

    total = jnp.sum(psum)
    count = jnp.sum(pcnt)
    # Guard the all-ignored case (torch would produce NaN here).
    return jnp.where(count > 0, total / jnp.maximum(count, 1.0), 0.0)


def _ref_loss(logits, target_depth):
    """Pure-JAX reference of the same forward pass (mask=None)."""
    t = jnp.round(
        jnp.log(target_depth / ALPHA) / LOG_BETA_OVER_ALPHA * (DEPTH_BINS - 1)
    ).astype(jnp.int32)
    x = jnp.transpose(logits, (0, 2, 3, 1)).reshape(-1, DEPTH_BINS)
    t = t.reshape(-1)
    lse = jax.scipy.special.logsumexp(x, axis=-1)
    picked = jnp.take_along_axis(x, t[:, None], axis=-1)[:, 0]
    return jnp.mean(lse - picked)


def _ref_loss_masked(logits, target_depth, mask):
    t = jnp.round(
        jnp.log(target_depth / ALPHA) / LOG_BETA_OVER_ALPHA * (DEPTH_BINS - 1)
    ).astype(jnp.int32)
    x = jnp.transpose(logits, (0, 2, 3, 1)).reshape(-1, DEPTH_BINS)
    t = t.reshape(-1)
    mf = mask.reshape(-1)
    lse = jax.scipy.special.logsumexp(x, axis=-1)
    picked = jnp.take_along_axis(x, t[:, None], axis=-1)[:, 0]
    per = lse - picked
    return jnp.sum(jnp.where(mf, per, 0.0)) / jnp.sum(mf.astype(jnp.float32))


if __name__ == "__main__":
    key = jax.random.PRNGKey(0)
    k1, k2 = jax.random.split(key)
    N, H, W = 2, 16, 16
    # prediction logits over depth bins (the 'metric_depth' key of the dict)
    logits = jax.random.normal(k1, (N, DEPTH_BINS, H, W), dtype=jnp.float32)
    # raw depth in [1, 10] so quantized bins fall in [0, depth_bins-1]
    depth = jax.random.uniform(k2, (N, H, W), minval=1.0, maxval=10.0,
                               dtype=jnp.float32)

    # mask = None path
    loss = discrete_nll_loss(logits, depth, mask=None, interpolate=True)
    loss = jax.block_until_ready(loss)
    ref = jax.block_until_ready(_ref_loss(logits, depth))
    assert jnp.allclose(loss, ref, rtol=1e-4, atol=1e-4), (loss, ref)

    # masked path
    mask = depth > 2.0
    loss_m = jax.block_until_ready(
        discrete_nll_loss(logits, depth, mask=mask, interpolate=True))
    ref_m = jax.block_until_ready(_ref_loss_masked(logits, depth, mask))
    assert jnp.allclose(loss_m, ref_m, rtol=1e-4, atol=1e-4), (loss_m, ref_m)

    print("KERNEL_OK")
</pallas_src>

<mosaic_0001>
module attributes {stable_mosaic.version = 11 : i64} {
  func.func @_nll_kernel(%arg0: i32, %arg1: i32, %arg2: memref<1x64x256xf32, #tpu.memory_space<vmem>>, %arg3: memref<1x1x256xf32, #tpu.memory_space<vmem>>, %arg4: memref<1x1x256xf32, #tpu.memory_space<vmem>>, %arg5: memref<1x1x128xf32, #tpu.memory_space<vmem>>, %arg6: memref<1x1x128xf32, #tpu.memory_space<vmem>>) attributes {dimension_semantics = [#tpu.dimension_semantics<parallel>, #tpu.dimension_semantics<parallel>], iteration_bounds = array<i64: 2, 1>, scalar_prefetch = 0 : i64, scratch_operands = 0 : i64, tpu.core_type = #tpu.core_type<tc>, window_params = [{transform_indices = @transform_0, window_bounds = array<i64: 1, 64, 256>}, {transform_indices = @transform_1, window_bounds = array<i64: 1, 1, 256>}, {transform_indices = @transform_2, window_bounds = array<i64: 1, 1, 256>}, {transform_indices = @transform_3, window_bounds = array<i64: 1, 1, 128>}, {transform_indices = @transform_4, window_bounds = array<i64: 1, 1, 128>}]} {
    %c0 = arith.constant 0 : index
    %c0_0 = arith.constant 0 : index
    %c0_1 = arith.constant 0 : index
    %0 = vector.load %arg2[%c0, %c0_0, %c0_1] : memref<1x64x256xf32, #tpu.memory_space<vmem>>, vector<1x64x256xf32>
    %1 = vector.shape_cast %0 : vector<1x64x256xf32> to vector<64x256xf32>
    %c0_2 = arith.constant 0 : index
    %c0_3 = arith.constant 0 : index
    %c0_4 = arith.constant 0 : index
    %2 = vector.load %arg3[%c0_2, %c0_3, %c0_4] : memref<1x1x256xf32, #tpu.memory_space<vmem>>, vector<1x1x256xf32>
    %3 = vector.shape_cast %2 : vector<1x1x256xf32> to vector<1x256xf32>
    %c0_5 = arith.constant 0 : index
    %c0_6 = arith.constant 0 : index
    %c0_7 = arith.constant 0 : index
    %4 = vector.load %arg4[%c0_5, %c0_6, %c0_7] : memref<1x1x256xf32, #tpu.memory_space<vmem>>, vector<1x1x256xf32>
    %5 = vector.shape_cast %4 : vector<1x1x256xf32> to vector<1x256xf32>
    %cst = arith.constant 1.000000e+00 : f32
    %6 = vector.broadcast %cst : f32 to vector<1x256xf32>
    %7 = arith.divf %3, %6 : vector<1x256xf32>
    %8 = math.log %7 : vector<1x256xf32>
    %cst_8 = arith.constant 2.39780426 : f32
    %9 = vector.broadcast %cst_8 : f32 to vector<1x256xf32>
    %10 = arith.divf %8, %9 : vector<1x256xf32>
    %cst_9 = arith.constant 6.300000e+01 : f32
    %11 = vector.broadcast %cst_9 : f32 to vector<1x256xf32>
    %12 = arith.mulf %10, %11 : vector<1x256xf32>
    %13 = math.roundeven %12 : vector<1x256xf32>
    %14 = arith.fptosi %13 : vector<1x256xf32> to vector<1x256xi32>
    %cst_10 = arith.constant 5.000000e-01 : f32
    %15 = vector.broadcast %cst_10 : f32 to vector<1x256xf32>
    %16 = arith.cmpf ogt, %5, %15 : vector<1x256xf32>
    %c-65_i32 = arith.constant -65 : i32
    %17 = vector.broadcast %c-65_i32 : i32 to vector<1x256xi32>
    %18 = arith.select %16, %14, %17 : vector<1x256xi1>, vector<1x256xi32>
    %c-65_i32_11 = arith.constant -65 : i32
    %19 = vector.broadcast %c-65_i32_11 : i32 to vector<1x256xi32>
    %20 = arith.cmpi ne, %18, %19 : vector<1x256xi32>
    %cst_12 = arith.constant dense<0xFF800000> : vector<256xf32>
    %21 = vector.multi_reduction <maximumf>, %1, %cst_12 [0] : vector<64x256xf32> to vector<256xf32>
    %22 = vector.shape_cast %21 : vector<256xf32> to vector<1x256xf32>
    %23 = vector.broadcast %22 : vector<1x256xf32> to vector<64x256xf32>
    %24 = arith.subf %1, %23 : vector<64x256xf32>
    %25 = math.exp %24 : vector<64x256xf32>
    %cst_13 = arith.constant dense<0.000000e+00> : vector<256xf32>
    %26 = vector.multi_reduction <add>, %25, %cst_13 [0] : vector<64x256xf32> to vector<256xf32>
    %27 = vector.shape_cast %26 : vector<256xf32> to vector<1x256xf32>
    %28 = math.log %27 : vector<1x256xf32>
    %29 = arith.addf %22, %28 : vector<1x256xf32>
    %30 = tpu.iota {dimensions = array<i32: 0>} : vector<64x256xi32>
    %31 = vector.broadcast %18 : vector<1x256xi32> to vector<64x256xi32>
    %32 = arith.cmpi eq, %30, %31 : vector<64x256xi32>
    %cst_14 = arith.constant 0.000000e+00 : f32
    %33 = vector.broadcast %cst_14 : f32 to vector<64x256xf32>
    %34 = arith.select %32, %1, %33 : vector<64x256xi1>, vector<64x256xf32>
    %cst_15 = arith.constant dense<0.000000e+00> : vector<256xf32>
    %35 = vector.multi_reduction <add>, %34, %cst_15 [0] : vector<64x256xf32> to vector<256xf32>
    %36 = vector.shape_cast %35 : vector<256xf32> to vector<1x256xf32>
    %37 = arith.subf %29, %36 : vector<1x256xf32>
    %cst_16 = arith.constant 0.000000e+00 : f32
    %38 = vector.broadcast %cst_16 : f32 to vector<1x256xf32>
    %39 = arith.select %20, %37, %38 : vector<1x256xi1>, vector<1x256xf32>
    %40 = vector.shape_cast %39 : vector<1x256xf32> to vector<1x1x256xf32>
    %cst_17 = arith.constant dense<0.000000e+00> : vector<1xf32>
    %41 = vector.multi_reduction <add>, %40, %cst_17 [1, 2] : vector<1x1x256xf32> to vector<1xf32>
    %42 = vector.shape_cast %41 : vector<1xf32> to vector<1x1x1xf32>
    %43 = vector.extract %42[0, 0, 0] : f32 from vector<1x1x1xf32>
    %44 = arith.extui %20 : vector<1x256xi1> to vector<1x256xi32>
    %45 = arith.sitofp %44 : vector<1x256xi32> to vector<1x256xf32>
    %46 = vector.shape_cast %45 : vector<1x256xf32> to vector<1x1x256xf32>
    %cst_18 = arith.constant dense<0.000000e+00> : vector<1xf32>
    %47 = vector.multi_reduction <add>, %46, %cst_18 [1, 2] : vector<1x1x256xf32> to vector<1xf32>
    %48 = vector.shape_cast %47 : vector<1xf32> to vector<1x1x1xf32>
    %49 = vector.extract %48[0, 0, 0] : f32 from vector<1x1x1xf32>
    %50 = tpu.iota {dimensions = array<i32: 2>} : vector<1x1x128xi32>
    %c0_i32 = arith.constant 0 : i32
    %51 = vector.broadcast %c0_i32 : i32 to vector<1x1x128xi32>
    %52 = arith.cmpi eq, %50, %51 : vector<1x1x128xi32>
    %cst_19 = arith.constant 0.000000e+00 : f32
    %53 = vector.broadcast %43 : f32 to vector<1x1x128xf32>
    %54 = vector.broadcast %cst_19 : f32 to vector<1x1x128xf32>
    %55 = arith.select %52, %53, %54 : vector<1x1x128xi1>, vector<1x1x128xf32>
    %c0_20 = arith.constant 0 : index
    %c0_21 = arith.constant 0 : index
    %c0_22 = arith.constant 0 : index
    %56 = vector.load %arg5[%c0_20, %c0_21, %c0_22] : memref<1x1x128xf32, #tpu.memory_space<vmem>>, vector<1x1x128xf32>
    tpu.vector_store %arg5[%c0_20, %c0_21, %c0_22], %55 {strides = array<i32>} : memref<1x1x128xf32, #tpu.memory_space<vmem>>, vector<1x1x128xf32>,
    %c0_i32_23 = arith.constant 0 : i32
    %57 = vector.broadcast %c0_i32_23 : i32 to vector<1x1x128xi32>
    %58 = arith.cmpi eq, %50, %57 : vector<1x1x128xi32>
    %cst_24 = arith.constant 0.000000e+00 : f32
    %59 = vector.broadcast %49 : f32 to vector<1x1x128xf32>
    %60 = vector.broadcast %cst_24 : f32 to vector<1x1x128xf32>
    %61 = arith.select %58, %59, %60 : vector<1x1x128xi1>, vector<1x1x128xf32>
    %c0_25 = arith.constant 0 : index
    %c0_26 = arith.constant 0 : index
    %c0_27 = arith.constant 0 : index
    %62 = vector.load %arg6[%c0_25, %c0_26, %c0_27] : memref<1x1x128xf32, #tpu.memory_space<vmem>>, vector<1x1x128xf32>
    tpu.vector_store %arg6[%c0_25, %c0_26, %c0_27], %61 {strides = array<i32>} : memref<1x1x128xf32, #tpu.memory_space<vmem>>, vector<1x1x128xf32>,
    return
  }
  func.func @transform_0(%arg0: i32, %arg1: i32) -> (i32, i32, i32) {
    %c0_i32 = arith.constant 0 : i32
    %c0_i32_0 = arith.constant 0 : i32
    return %arg0, %c0_i32, %arg1 : i32, i32, i32
  }
  func.func @transform_1(%arg0: i32, %arg1: i32) -> (i32, i32, i32) {
    %c0_i32 = arith.constant 0 : i32
    %c0_i32_0 = arith.constant 0 : i32
    return %arg0, %c0_i32, %arg1 : i32, i32, i32
  }
  func.func @transform_2(%arg0: i32, %arg1: i32) -> (i32, i32, i32) {
    %c0_i32 = arith.constant 0 : i32
    %c0_i32_0 = arith.constant 0 : i32
    return %arg0, %c0_i32, %arg1 : i32, i32, i32
  }
  func.func @transform_3(%arg0: i32, %arg1: i32) -> (i32, i32, i32) {
    %c0_i32 = arith.constant 0 : i32
    %c0_i32_0 = arith.constant 0 : i32
    return %arg0, %c0_i32, %arg1 : i32, i32, i32
  }
  func.func @transform_4(%arg0: i32, %arg1: i32) -> (i32, i32, i32) {
    %c0_i32 = arith.constant 0 : i32
    %c0_i32_0 = arith.constant 0 : i32
    return %arg0, %c0_i32, %arg1 : i32, i32, i32
  }
}

</mosaic_0001>

<llo_original>
// kernel: discrete_nll_loss.1
$region0: #{discrete_nll_loss.1}
  #allocation0 [shape = 'u32[]', space=smem, size = 0x4, offset = 0x4, fixed_abs, tag = 'smem constant byte address 0x4 - core index']
  #allocation1 [shape = 'u32[72,128]{1,0:T(1,128)}', space=vmem, size = 0x9000, scoped, tag = 'internal scratch']
  %s0 = inlined_call_operand.vmem [shape: f32[2,64,256], index: 0, kind: input, shape index: {}]
  %s1 = inlined_call_operand.vmem [shape: f32[2,1,256], index: 1, kind: input, shape index: {}]
  %s2 = inlined_call_operand.vmem [shape: f32[2,1,256], index: 2, kind: input, shape index: {}]
  %s3 = inlined_call_operand.vmem [shape: f32[2,1,128], index: 3, kind: output, shape index: {0}]
  %s4 = inlined_call_operand.vmem [shape: f32[2,1,128], index: 4, kind: output, shape index: {1}]
  %5 = xla_tuple %s3, %s4
  %s6 = sld [smem:[#allocation0]]
  $region53: #{discrete_nll_loss.1} parent=0
    _
  %s8 = ssub.s32 1, %s6
  %s9 = scalar_select 0, %s8, %s6
  loop: start=0, step=1, limit=4
  $region2: #{discrete_nll_loss.1} parent=0 // loop_pre_header
    _
  $region3: #{discrete_nll_loss.1} parent=0 // loop_header
    %s11 = sphi 0, %s15
    %p12 = scmp.ge.s32.totalorder %s11, 4
    %s18 = sphi 0, %s30
    %s19 = sphi 0, %s26
    %s20 = sphi 0, %s18
    %s21 = sphi 0, %s19
    %s22 = sphi 0, %s20
    %s23 = sphi 0, %s21
    %s35 = sphi 0, %s37
    %s38 = sphi 0, %s35
    %s39 = sphi 0, %s38
    %s55 = sphi 0, %s39
    %s63 = sphi 0, %s65
    %s66 = sphi 0, %s63
    %s67 = sphi 0, %s66
    %s83 = sphi 0, %s67
    %s91 = sphi 0, %s93
    %s94 = sphi 0, %s91
    %s95 = sphi 0, %s94
    %s111 = sphi 0, %s95
    %s119 = sphi 0, %s121
    %s122 = sphi 0, %s119
    %s123 = sphi 0, %s122
    %s139 = sphi 0, %s123
    %s147 = sphi 0, %s149
    %s150 = sphi 0, %s147
    %s151 = sphi 0, %s150
    %s167 = sphi 0, %s151
  $region4: #{discrete_nll_loss.1} parent=0 // loop_header_branch
    %14 = sbr.rel (%p12) target = $region8
  $region5: #{discrete_nll_loss.1} parent=0 // loop_body
    %s16 = ssub.s32 %s11, 1
    %s17 = ssub.s32 %s11, 2
    %s24 = sadd.s32 1, %s19
    %p25 = scmp.ge.s32.totalorder %s24, 1
    %s26 = scalar_select %p25, 0, %s24
    %s27 = sadd.s32 1, %s18
    %s28 = scalar_select %p25, %s27, %s18
    %p29 = scmp.ge.s32.totalorder %s28, 2
    %s30 = scalar_select %p29, 0, %s28
    %s31 = ssub.s32 %s18, %s30
    %s32 = ssub.s32 %s19, %s26
    %s33 = sor.u32 %s31, %s32
    %p34 = scmp.eq.s32.totalorder %s33, 0
    %s36 = sadd.s32 %s35, 1
    %s37 = scalar_select %p34, %s35, %s36
    %p40 = pneg %p34
    %p41 = scmp.eq.s32.totalorder %s11, 1
    %p42 = por %p40, %p41
    %p43 = scmp.ne.s32.totalorder %s35, %s38
    %p44 = scmp.eq.s32.totalorder %s11, 0
    %p45 = por %p43, %p44
    %p46 = scmp.ne.s32.totalorder %s35, %s38
    %p47 = scmp.eq.s32.totalorder %s16, 1
    %p48 = por %p46, %p47
    %p49 = scmp.ne.s32.totalorder %s38, %s39
    %p50 = scmp.eq.s32.totalorder %s16, 0
    %p51 = por %p49, %p50
    %p52 = scmp.ne.s32.totalorder %s38, %s39
    %p53 = scmp.eq.s32.totalorder %s17, 1
    %p54 = por %p52, %p53
    %p56 = scmp.ne.s32.totalorder %s39, %s55
    %p57 = scmp.eq.s32.totalorder %s17, 0
    %p58 = por %p56, %p57
    %s59 = ssub.s32 %s18, %s30
    %s60 = ssub.s32 %s19, %s26
    %s61 = sor.u32 %s59, %s60
    %p62 = scmp.eq.s32.totalorder %s61, 0
    %s64 = sadd.s32 %s63, 1
    %s65 = scalar_select %p62, %s63, %s64
    %p68 = pneg %p62
    %p69 = scmp.eq.s32.totalorder %s11, 1
    %p70 = por %p68, %p69
    %p71 = scmp.ne.s32.totalorder %s63, %s66
    %p72 = scmp.eq.s32.totalorder %s11, 0
    %p73 = por %p71, %p72
    %p74 = scmp.ne.s32.totalorder %s63, %s66
    %p75 = scmp.eq.s32.totalorder %s16, 1
    %p76 = por %p74, %p75
    %p77 = scmp.ne.s32.totalorder %s66, %s67
    %p78 = scmp.eq.s32.totalorder %s16, 0
    %p79 = por %p77, %p78
    %p80 = scmp.ne.s32.totalorder %s66, %s67
    %p81 = scmp.eq.s32.totalorder %s17, 1
    %p82 = por %p80, %p81
    %p84 = scmp.ne.s32.totalorder %s67, %s83
    %p85 = scmp.eq.s32.totalorder %s17, 0
    %p86 = por %p84, %p85
    %s87 = ssub.s32 %s18, %s30
    %s88 = ssub.s32 %s19, %s26
    %s89 = sor.u32 %s87, %s88
    %p90 = scmp.eq.s32.totalorder %s89, 0
    %s92 = sadd.s32 %s91, 1
    %s93 = scalar_select %p90, %s91, %s92
    %p96 = pneg %p90
    %p97 = scmp.eq.s32.totalorder %s11, 1
    %p98 = por %p96, %p97
    %p99 = scmp.ne.s32.totalorder %s91, %s94
    %p100 = scmp.eq.s32.totalorder %s11, 0
    %p101 = por %p99, %p100
    %p102 = scmp.ne.s32.totalorder %s91, %s94
    %p103 = scmp.eq.s32.totalorder %s16, 1
    %p104 = por %p102, %p103
    %p105 = scmp.ne.s32.totalorder %s94, %s95
    %p106 = scmp.eq.s32.totalorder %s16, 0
    %p107 = por %p105, %p106
    %p108 = scmp.ne.s32.totalorder %s94, %s95
    %p109 = scmp.eq.s32.totalorder %s17, 1
    %p110 = por %p108, %p109
    %p112 = scmp.ne.s32.totalorder %s95, %s111
    %p113 = scmp.eq.s32.totalorder %s17, 0
    %p114 = por %p112, %p113
    %s115 = ssub.s32 %s18, %s30
    %s116 = ssub.s32 %s19, %s26
    %s117 = sor.u32 %s115, %s116
    %p118 = scmp.eq.s32.totalorder %s117, 0
    %s120 = sadd.s32 %s119, 1
    %s121 = scalar_select %p118, %s119, %s120
    %p124 = pneg %p118
    %p125 = scmp.eq.s32.totalorder %s11, 1
    %p126 = por %p124, %p125
    %p127 = scmp.ne.s32.totalorder %s119, %s122
    %p128 = scmp.eq.s32.totalorder %s11, 0
    %p129 = por %p127, %p128
    %p130 = scmp.ne.s32.totalorder %s119, %s122
    %p131 = scmp.eq.s32.totalorder %s16, 1
    %p132 = por %p130, %p131
    %p133 = scmp.ne.s32.totalorder %s122, %s123
    %p134 = scmp.eq.s32.totalorder %s16, 0
    %p135 = por %p133, %p134
    %p136 = scmp.ne.s32.totalorder %s122, %s123
    %p137 = scmp.eq.s32.totalorder %s17, 1
    %p138 = por %p136, %p137
    %p140 = scmp.ne.s32.totalorder %s123, %s139
    %p141 = scmp.eq.s32.totalorder %s17, 0
    %p142 = por %p140, %p141
    %s143 = ssub.s32 %s18, %s30
    %s144 = ssub.s32 %s19, %s26
    %s145 = sor.u32 %s143, %s144
    %p146 = scmp.eq.s32.totalorder %s145, 0
    %s148 = sadd.s32 %s147, 1
    %s149 = scalar_select %p146, %s147, %s148
    %p152 = pneg %p146
    %p153 = scmp.eq.s32.totalorder %s11, 1
    %p154 = por %p152, %p153
    %p155 = scmp.ne.s32.totalorder %s147, %s150
    %p156 = scmp.eq.s32.totalorder %s11, 0
    %p157 = por %p155, %p156
    %p158 = scmp.ne.s32.totalorder %s147, %s150
    %p159 = scmp.eq.s32.totalorder %s16, 1
    %p160 = por %p158, %p159
    %p161 = scmp.ne.s32.totalorder %s150, %s151
    %p162 = scmp.eq.s32.totalorder %s16, 0
    %p163 = por %p161, %p162
    %p164 = scmp.ne.s32.totalorder %s150, %s151
    %p165 = scmp.eq.s32.totalorder %s17, 1
    %p166 = por %p164, %p165
    %p168 = scmp.ne.s32.totalorder %s151, %s167
    %p169 = scmp.eq.s32.totalorder %s17, 0
    %p170 = por %p168, %p169
    %p171 = scmp.le.s32.totalorder 1, %s11
    %p172 = scmp.lt.s32.totalorder %s11, 3
    %p173 = pnand %p171, %p172
    %p174 = pneg %p173
    // Predicated region
    $region9: #{discrete_nll_loss.1} parent=5 // pred_check
      _
    $region10: #{discrete_nll_loss.1} parent=5 // pred_check_branch
      %176 = sbr.rel (%p173) target = $region12
    $region11: #{discrete_nll_loss.1} parent=5 // pred_region
      %s177 = ssub.s32 %s11, 1
    $region12: #{discrete_nll_loss.1} parent=5 // pred_fallthru
      _
    %p178 = scmp.lt.s32.totalorder %s11, 2
    // Predicated region
    $region13: #{discrete_nll_loss.1} parent=5 // pred_check
      %p179 = pneg %p178
    $region14: #{discrete_nll_loss.1} parent=5 // pred_check_branch
      %181 = sbr.rel (%p179) target = $region16
    $region15: #{discrete_nll_loss.1} parent=5 // pred_region
      // Predicated region
      $region17: #{discrete_nll_loss.1} parent=15 // pred_check
        %p182 = pneg %p45
      $region18: #{discrete_nll_loss.1} parent=15 // pred_check_branch
        %184 = sbr.rel (%p182) target = $region20
      $region19: #{discrete_nll_loss.1} parent=15 // pred_region
        %s185 = smul.u32 2, %s19
        %p186 = scmp.lt.s32.totalorder %s18, 1
        %s187 = scalar_select %p186, %s18, 1
        %p188 = scmp.lt.s32.totalorder %s185, 1
        %s189 = scalar_select %p188, %s185, 1
        %s190 = smul.addr %s187, 16
        %s191 = sadd.s32 %s189, %s190
        %s192 = smul.addr %s191, 8
        %s193 = scalar_lea.vmem %s0, %s192
        %s194 = smul.u32 2, %s19
      $region20: #{discrete_nll_loss.1} parent=15 // pred_fallthru
        _
      // Predicated region
      $region21: #{discrete_nll_loss.1} parent=15 // pred_check
        %p195 = pneg %p73
      $region22: #{discrete_nll_loss.1} parent=15 // pred_check_branch
        %197 = sbr.rel (%p195) target = $region24
      $region23: #{discrete_nll_loss.1} parent=15 // pred_region
        %s198 = smul.u32 2, %s19
        %p199 = scmp.lt.s32.totalorder %s18, 1
        %s200 = scalar_select %p199, %s18, 1
        %p201 = scmp.lt.s32.totalorder %s198, 1
        %s202 = scalar_select %p201, %s198, 1
        %s203 = smul.addr %s200, 2
        %s204 = sadd.s32 %s202, %s203
        %s205 = scalar_lea.vmem %s1, %s204
        %s206 = smul.u32 2, %s19
      $region24: #{discrete_nll_loss.1} parent=15 // pred_fallthru
        _
      // Predicated region
      $region25: #{discrete_nll_loss.1} parent=15 // pred_check
        %p207 = pneg %p101
      $region26: #{discrete_nll_loss.1} parent=15 // pred_check_branch
        %209 = sbr.rel (%p207) target = $region28
      $region27: #{discrete_nll_loss.1} parent=15 // pred_region
        %s210 = smul.u32 2, %s19
        %p211 = scmp.lt.s32.totalorder %s18, 1
        %s212 = scalar_select %p211, %s18, 1
        %p213 = scmp.lt.s32.totalorder %s210, 1
        %s214 = scalar_select %p213, %s210, 1
        %s215 = smul.addr %s212, 2
        %s216 = sadd.s32 %s214, %s215
        %s217 = scalar_lea.vmem %s2, %s216
        %s218 = smul.u32 2, %s19
      $region28: #{discrete_nll_loss.1} parent=15 // pred_fallthru
        _
    $region16: #{discrete_nll_loss.1} parent=5 // pred_fallthru
      _
    %p219 = scmp.le.s32.totalorder 1, %s11
    %p220 = scmp.lt.s32.totalorder %s11, 3
    %p221 = pnand %p219, %p220
    %p222 = pneg %p221
    // Predicated region
    $region29: #{discrete_nll_loss.1} parent=5 // pred_check
      _
    $region30: #{discrete_nll_loss.1} parent=5 // pred_check_branch
      %224 = sbr.rel (%p221) target = $region32
    $region31: #{discrete_nll_loss.1} parent=5 // pred_region
      %s225 = ssub.s32 %s11, 1
      %s226 = smul.u32 2, %s21
      %p227 = scmp.lt.s32.totalorder %s20, 1
      %s228 = scalar_select %p227, %s20, 1
      %p229 = scmp.lt.s32.totalorder %s226, 1
      %s230 = scalar_select %p229, %s226, 1
      %s231 = smul.addr %s228, 16
      %s232 = sadd.s32 %s230, %s231
      %s233 = smul.addr %s232, 8
      %s234 = scalar_lea.vmem %s0, %s233
      %p235 = pneg %p51
      %p236 = pneg %p48
      %s237 = smul.u32 2, %s21
      %p238 = scmp.lt.s32.totalorder %s20, 1
      %s239 = scalar_select %p238, %s20, 1
      %p240 = scmp.lt.s32.totalorder %s237, 1
      %s241 = scalar_select %p240, %s237, 1
      %s242 = smul.addr %s239, 2
      %s243 = sadd.s32 %s241, %s242
      %s244 = scalar_lea.vmem %s1, %s243
      %p245 = pneg %p79
      %p246 = pneg %p76
      %s247 = smul.u32 2, %s21
      %p248 = scmp.lt.s32.totalorder %s20, 1
      %s249 = scalar_select %p248, %s20, 1
      %p250 = scmp.lt.s32.totalorder %s247, 1
      %s251 = scalar_select %p250, %s247, 1
      %s252 = smul.addr %s249, 2
      %s253 = sadd.s32 %s251, %s252
      %s254 = scalar_lea.vmem %s2, %s253
      %p255 = pneg %p107
      %p256 = pneg %p104
      %p257 = pneg %p135
      %p258 = pneg %p132
      %p259 = scmp.lt.s32.totalorder %s20, 1
      %s260 = scalar_select %p259, %s20, 1
      %p261 = scmp.lt.s32.totalorder %s21, 0
      %s262 = scalar_select %p261, %s21, 0
      %s263 = sadd.s32 %s262, %s260
      %s264 = scalar_lea.vmem %s3, %s263
      %p265 = pneg %p163
      %p266 = pneg %p160
      %p267 = scmp.lt.s32.totalorder %s20, 1
      %s268 = scalar_select %p267, %s20, 1
      %p269 = scmp.lt.s32.totalorder %s21, 0
      %s270 = scalar_select %p269, %s21, 0
      %s271 = sadd.s32 %s270, %s268
      %s272 = scalar_lea.vmem %s4, %s271
      %s273 = smul.u32 2, %s21
      %p274 = scmp.lt.s32.totalorder %s20, 1
      %s275 = scalar_select %p274, %s20, 1
      %p276 = scmp.lt.s32.totalorder %s273, 1
      %s277 = scalar_select %p276, %s273, 1
      %s278 = smul.addr %s275, 16
      %s279 = sadd.s32 %s277, %s278
      %s280 = smul.addr %s279, 8
      %s281 = scalar_lea.vmem %s0, %s280
      %s282 = smul.u32 2, %s21
      %s283 = smul.u32 2, %s21
      %p284 = scmp.lt.s32.totalorder %s20, 1
      %s285 = scalar_select %p284, %s20, 1
      %p286 = scmp.lt.s32.totalorder %s283, 1
      %s287 = scalar_select %p286, %s283, 1
      %s288 = smul.addr %s285, 2
      %s289 = sadd.s32 %s287, %s288
      %s290 = scalar_lea.vmem %s1, %s289
      %s291 = smul.u32 2, %s21
      %s292 = smul.u32 2, %s21
      %p293 = scmp.lt.s32.totalorder %s20, 1
      %s294 = scalar_select %p293, %s20, 1
      %p295 = scmp.lt.s32.totalorder %s292, 1
      %s296 = scalar_select %p295, %s292, 1
      %s297 = smul.addr %s294, 2
      %s298 = sadd.s32 %s296, %s297
      %s299 = scalar_lea.vmem %s2, %s298
      %s300 = smul.u32 2, %s21
      %p301 = scmp.lt.s32.totalorder %s20, 1
      %s302 = scalar_select %p301, %s20, 1
      %p303 = scmp.lt.s32.totalorder %s21, 0
      %s304 = scalar_select %p303, %s21, 0
      %s305 = sadd.s32 %s304, %s302
      %s306 = scalar_lea.vmem %s3, %s305
      %p307 = scmp.lt.s32.totalorder %s20, 1
      %s308 = scalar_select %p307, %s20, 1
      %p309 = scmp.lt.s32.totalorder %s21, 0
      %s310 = scalar_select %p309, %s21, 0
      %s311 = sadd.s32 %s310, %s308
      %s312 = scalar_lea.vmem %s4, %s311
      %v313 = vld [vmem:[%s281] sm:$0xff]
      %v314 = vld [vmem:[%s281 + $0x8] sm:$0xff]
      %v315 = vld [vmem:[%s281 + $0x10] sm:$0xff]
      %v316 = vld [vmem:[%s281 + $0x18] sm:$0xff]
      %v317 = vld [vmem:[%s281 + $0x20] sm:$0xff]
      %v318 = vld [vmem:[%s281 + $0x28] sm:$0xff]
      %v319 = vld [vmem:[%s281 + $0x30] sm:$0xff]
      %v320 = vld [vmem:[%s281 + $0x38] sm:$0xff]
      %v321 = vld [vmem:[%s281 + $0x40] sm:$0xff]
      %v322 = vld [vmem:[%s281 + $0x48] sm:$0xff]
      %v323 = vld [vmem:[%s281 + $0x50] sm:$0xff]
      %v324 = vld [vmem:[%s281 + $0x58] sm:$0xff]
      %v325 = vld [vmem:[%s281 + $0x60] sm:$0xff]
      %v326 = vld [vmem:[%s281 + $0x68] sm:$0xff]
      %v327 = vld [vmem:[%s281 + $0x70] sm:$0xff]
      %v328 = vld [vmem:[%s281 + $0x78] sm:$0xff]
      %v329 = vld [vmem:[%s290] sm:$0x3]
      %v330 = vld [vmem:[%s299] sm:$0x3]
      %v331 = vlog2.pop %v329
      %v332 = vmul.f32 %v331, 0.6931472
      %v333 = vrcp.pop 2.3978043
      %v334 = vmul.f32 2.3978043, %v333
      %v335 = vsub.f32 1.0, %v334
      %v336 = vmul.f32 %v333, %v335
      %v337 = vadd.f32 %v333, %v336
      %vm338 = vweird.f32 %v333
      %v339 = vsel %vm338, %v333, %v337
      %v340 = vmul.f32 %v332, %v339
      %v341 = vmul.f32 %v340, 63.0
      %v342 = vcvt.f32.s32.ties.to.even %v341
      %vm343 = vcmp.gt.f32.partialorder %v330, 0.5
      %v344 = vsel %vm343, %v342, 4294967231
      %vm345 = vcmp.ne.s32.totalorder %v344, 4294967231
      %v346 = vmax.f32 %v313, %v317
      %v347 = vmax.f32 %v315, %v319
      %v348 = vmax.f32 %v346, %v321
      %v349 = vmax.f32 %v347, %v323
      %v350 = vmax.f32 %v348, %v325
      %v351 = vmax.f32 %v349, %v327
      %v352 = vmax.f32 %v350, %v351
      %v353 = vrot.slane %v352, 4
      %v354 = vmax.f32 %v352, %v353
      %v355 = vrot.slane %v354, 2
      %v356 = vmax.f32 %v354, %v355
      %v357 = vrot.slane %v356, 1
      %v358 = vmax.f32 %v356, %v357
      %v359 = vmax.f32 %v314, %v318
      %v360 = vmax.f32 %v316, %v320
      %v361 = vmax.f32 %v359, %v322
      %v362 = vmax.f32 %v360, %v324
      %v363 = vmax.f32 %v361, %v326
      %v364 = vmax.f32 %v362, %v328
      %v365 = vmax.f32 %v363, %v364
      %v366 = vrot.slane %v365, 4
      %v367 = vmax.f32 %v365, %v366
      %v368 = vrot.slane %v367, 2
      %v369 = vmax.f32 %v367, %v368
      %v370 = vrot.slane %v369, 1
      %v371 = vmax.f32 %v369, %v370
      %v372 = vsub.f32 %v313, %v358
      %v373 = vsub.f32 %v314, %v371
      %v374 = vsub.f32 %v315, %v358
      %v375 = vsub.f32 %v316, %v371
      %v376 = vsub.f32 %v317, %v358
      %v377 = vsub.f32 %v318, %v371
      %v378 = vsub.f32 %v319, %v358
      %v379 = vsub.f32 %v320, %v371
      %v380 = vsub.f32 %v321, %v358
      %v381 = vsub.f32 %v322, %v371
      %v382 = vsub.f32 %v323, %v358
      %v383 = vsub.f32 %v324, %v371
      %v384 = vsub.f32 %v325, %v358
      %v385 = vsub.f32 %v326, %v371
      %v386 = vsub.f32 %v327, %v358
      %v387 = vsub.f32 %v328, %v371
      %v388 = vmul.f32 %v372, 1.442695
      %v389 = vpow.pop %v388
      %v390 = vmul.f32 %v373, 1.442695
      %v391 = vpow.pop %v390
      %v392 = vmul.f32 %v374, 1.442695
      %v393 = vpow.pop %v392
      %v394 = vmul.f32 %v375, 1.442695
      %v395 = vpow.pop %v394
      %v396 = vmul.f32 %v376, 1.442695
      %v397 = vpow.pop %v396
      %v398 = vmul.f32 %v377, 1.442695
      %v399 = vpow.pop %v398
      %v400 = vmul.f32 %v378, 1.442695
      %v401 = vpow.pop %v400
      %v402 = vmul.f32 %v379, 1.442695
      %v403 = vpow.pop %v402
      %v404 = vmul.f32 %v380, 1.442695
      %v405 = vpow.pop %v404
      %v406 = vmul.f32 %v381, 1.442695
      %v407 = vpow.pop %v406
      %v408 = vmul.f32 %v382, 1.442695
      %v409 = vpow.pop %v408
      %v410 = vmul.f32 %v383, 1.442695
      %v411 = vpow.pop %v410
      %v412 = vmul.f32 %v384, 1.442695
      %v413 = vpow.pop %v412
      %v414 = vmul.f32 %v385, 1.442695
      %v415 = vpow.pop %v414
      %v416 = vmul.f32 %v386, 1.442695
      %v417 = vpow.pop %v416
      %v418 = vmul.f32 %v387, 1.442695
      %v419 = vpow.pop %v418
      %v420 = vadd.f32 %v389, %v393
      %v421 = vadd.f32 %v420, %v397
      %v422 = vadd.f32 %v421, %v401
      %v423 = vadd.f32 %v422, %v405
      %v424 = vadd.f32 %v423, %v409
      %v425 = vadd.f32 %v424, %v413
      %v426 = vadd.f32 %v425, %v417
      %v427 = vrot.slane %v426, 4
      %v428 = vadd.f32 %v426, %v427
      %v429 = vrot.slane %v428, 2
      %v430 = vadd.f32 %v428, %v429
      %v431 = vrot.slane %v430, 1
      %v432 = vadd.f32 %v430, %v431
      %v433 = vadd.f32 %v391, %v395
      %v434 = vadd.f32 %v433, %v399
      %v435 = vadd.f32 %v434, %v403
      %v436 = vadd.f32 %v435, %v407
      %v437 = vadd.f32 %v436, %v411
      %v438 = vadd.f32 %v437, %v415
      %v439 = vadd.f32 %v438, %v419
      %v440 = vrot.slane %v439, 4
      %v441 = vadd.f32 %v439, %v440
      %v442 = vrot.slane %v441, 2
      %v443 = vadd.f32 %v441, %v442
      %v444 = vrot.slane %v443, 1
      %v445 = vadd.f32 %v443, %v444
      %v446 = vlog2.pop %v432
      %v447 = vmul.f32 %v446, 0.6931472
      %v448 = vlog2.pop %v445
      %v449 = vmul.f32 %v448, 0.6931472
      %v450 = vadd.f32 %v358, %v447
      %v451 = vadd.f32 %v371, %v449
      %v452 = vlaneseq
      %v453 = vshrl.u32 %v452, 7
      %v454 = vadd.s32 %v453, 8
      %v455 = vadd.s32 %v453, 16
      %v456 = vadd.s32 %v453, 24
      %v457 = vadd.s32 %v453, 32
      %v458 = vadd.s32 %v453, 40
      %v459 = vadd.s32 %v453, 48
      %v460 = vadd.s32 %v453, 56
      %v461 = vperm.slane %v344, 0
      %v462 = vperm.slane %v344, 1
      %vm463 = vcmp.eq.s32.totalorder %v453, %v461
      %vm464 = vcmp.eq.s32.totalorder %v453, %v462
      %vm465 = vcmp.eq.s32.totalorder %v454, %v461
      %vm466 = vcmp.eq.s32.totalorder %v454, %v462
      %vm467 = vcmp.eq.s32.totalorder %v455, %v461
      %vm468 = vcmp.eq.s32.totalorder %v455, %v462
      %vm469 = vcmp.eq.s32.totalorder %v456, %v461
      %vm470 = vcmp.eq.s32.totalorder %v456, %v462
      %vm471 = vcmp.eq.s32.totalorder %v457, %v461
      %vm472 = vcmp.eq.s32.totalorder %v457, %v462
      %vm473 = vcmp.eq.s32.totalorder %v458, %v461
      %vm474 = vcmp.eq.s32.totalorder %v458, %v462
      %vm475 = vcmp.eq.s32.totalorder %v459, %v461
      %vm476 = vcmp.eq.s32.totalorder %v459, %v462
      %vm477 = vcmp.eq.s32.totalorder %v460, %v461
      %vm478 = vcmp.eq.s32.totalorder %v460, %v462
      %v479 = vsel %vm463, %v313, 0.0
      %v480 = vsel %vm464, %v314, 0.0
      %v481 = vsel %vm465, %v315, 0.0
      %v482 = vsel %vm466, %v316, 0.0
      %v483 = vsel %vm467, %v317, 0.0
      %v484 = vsel %vm468, %v318, 0.0
      %v485 = vsel %vm469, %v319, 0.0
      %v486 = vsel %vm470, %v320, 0.0
      %v487 = vsel %vm471, %v321, 0.0
      %v488 = vsel %vm472, %v322, 0.0
      %v489 = vsel %vm473, %v323, 0.0
      %v490 = vsel %vm474, %v324, 0.0
      %v491 = vsel %vm475, %v325, 0.0
      %v492 = vsel %vm476, %v326, 0.0
      %v493 = vsel %vm477, %v327, 0.0
      %v494 = vsel %vm478, %v328, 0.0
      %v495 = vadd.f32 %v479, %v481
      %v496 = vadd.f32 %v495, %v483
      %v497 = vadd.f32 %v496, %v485
      %v498 = vadd.f32 %v497, %v487
      %v499 = vadd.f32 %v498, %v489
      %v500 = vadd.f32 %v499, %v491
      %v501 = vadd.f32 %v500, %v493
      %v502 = vrot.slane %v501, 4
      %v503 = vadd.f32 %v501, %v502
      %v504 = vrot.slane %v503, 2
      %v505 = vadd.f32 %v503, %v504
      %v506 = vrot.slane %v505, 1
      %v507 = vadd.f32 %v505, %v506
      %v508 = vadd.f32 %v480, %v482
      %v509 = vadd.f32 %v508, %v484
      %v510 = vadd.f32 %v509, %v486
      %v511 = vadd.f32 %v510, %v488
      %v512 = vadd.f32 %v511, %v490
      %v513 = vadd.f32 %v512, %v492
      %v514 = vadd.f32 %v513, %v494
      %v515 = vrot.slane %v514, 4
      %v516 = vadd.f32 %v514, %v515
      %v517 = vrot.slane %v516, 2
      %v518 = vadd.f32 %v516, %v517
      %v519 = vrot.slane %v518, 1
      %v520 = vadd.f32 %v518, %v519
      %v521 = vsub.f32 %v450, %v507
      %v522 = vsub.f32 %v451, %v520
      %v525 = vrot.slane %v522, 7
      %vm526 = vcmask 1040384
      %v527 = vsel %vm526, %v521, %v525
      %v529 = vsel %vm345, %v527, 0.0
      %v531 = vperm.slane %v529, 0
      %v532 = vperm.slane %v529, 1
      %v535 = vsel %vm526, %v531, 0.0
      %v536 = vsel %vm526, %v532, 0.0
      %v537 = vadd.f32 %v535, %v536
      %538 = vadd.xlane.f32.xlu0 %v537
      %v539 = vpop.xlane.xlu0 %538
      %v540 = vrot.slane %v539, 4
      %v541 = vadd.f32 %v539, %v540
      %v542 = vrot.slane %v541, 2
      %v543 = vadd.f32 %v541, %v542
      %v544 = vrot.slane %v543, 1
      %v545 = vadd.f32 %v543, %v544
      %s546 = vtos %v545
      %v547 = vsel %vm345, 1, 0
      %v548 = vcvt.s32.f32 %v547
      %v550 = vperm.slane %v548, 0
      %v551 = vperm.slane %v548, 1
      %v554 = vsel %vm526, %v550, 0.0
      %v555 = vsel %vm526, %v551, 0.0
      %v556 = vadd.f32 %v554, %v555
      %557 = vadd.xlane.f32.xlu0 %v556
      %v558 = vpop.xlane.xlu0 %557
      %v559 = vrot.slane %v558, 4
      %v560 = vadd.f32 %v558, %v559
      %v561 = vrot.slane %v560, 2
      %v562 = vadd.f32 %v560, %v561
      %v563 = vrot.slane %v562, 1
      %v564 = vadd.f32 %v562, %v563
      %s565 = vtos %v564
      %v566 = vlaneseq
      %v567 = vand.u32 %v566, 127
      %vm568 = vcmp.eq.s32.totalorder %v567, 0
      %v569 = vstv %s546
      %v570 = vsel %vm568, %v569, 0.0
      %571 = vst [vmem:[%s306] sm:$0x1] %v570
      %v572 = vstv %s565
      %v573 = vsel %vm568, %v572, 0.0
      %574 = vst [vmem:[%s312] sm:$0x1] %v573
      %p575 = scmp.lt.s32.totalorder %s20, 1
      %s576 = scalar_select %p575, %s20, 1
      %p577 = scmp.lt.s32.totalorder %s21, 0
      %s578 = scalar_select %p577, %s21, 0
      %s579 = sadd.s32 %s578, %s576
      %s580 = scalar_lea.vmem %s3, %s579
      %p581 = scmp.lt.s32.totalorder %s20, 1
      %s582 = scalar_select %p581, %s20, 1
      %p583 = scmp.lt.s32.totalorder %s21, 0
      %s584 = scalar_select %p583, %s21, 0
      %s585 = sadd.s32 %s584, %s582
      %s586 = scalar_lea.vmem %s4, %s585
      // Predicated region
      $region33: #{discrete_nll_loss.1} parent=31 // pred_check
        %p587 = pneg %p132
      $region34: #{discrete_nll_loss.1} parent=31 // pred_check_branch
        %589 = sbr.rel (%p587) target = $region36
      $region35: #{discrete_nll_loss.1} parent=31 // pred_region
        _
      $region36: #{discrete_nll_loss.1} parent=31 // pred_fallthru
        _
      // Predicated region
      $region37: #{discrete_nll_loss.1} parent=31 // pred_check
        %p590 = pneg %p160
      $region38: #{discrete_nll_loss.1} parent=31 // pred_check_branch
        %592 = sbr.rel (%p590) target = $region40
      $region39: #{discrete_nll_loss.1} parent=31 // pred_region
        _
      $region40: #{discrete_nll_loss.1} parent=31 // pred_fallthru
        _
    $region32: #{discrete_nll_loss.1} parent=5 // pred_fallthru
      _
    %p593 = scmp.le.s32.totalorder 2, %s11
    // Predicated region
    $region41: #{discrete_nll_loss.1} parent=5 // pred_check
      %p594 = pneg %p593
    $region42: #{discrete_nll_loss.1} parent=5 // pred_check_branch
      %596 = sbr.rel (%p594) target = $region44
    $region43: #{discrete_nll_loss.1} parent=5 // pred_region
      %s597 = ssub.s32 %s11, 2
      // Predicated region
      $region45: #{discrete_nll_loss.1} parent=43 // pred_check
        %p598 = pneg %p138
      $region46: #{discrete_nll_loss.1} parent=43 // pred_check_branch
        %600 = sbr.rel (%p598) target = $region48
      $region47: #{discrete_nll_loss.1} parent=43 // pred_region
        %p601 = scmp.lt.s32.totalorder %s22, 1
        %s602 = scalar_select %p601, %s22, 1
        %p603 = scmp.lt.s32.totalorder %s23, 0
        %s604 = scalar_select %p603, %s23, 0
        %s605 = sadd.s32 %s604, %s602
        %s606 = scalar_lea.vmem %s3, %s605
      $region48: #{discrete_nll_loss.1} parent=43 // pred_fallthru
        _
      // Predicated region
      $region49: #{discrete_nll_loss.1} parent=43 // pred_check
        %p607 = pneg %p166
      $region50: #{discrete_nll_loss.1} parent=43 // pred_check_branch
        %609 = sbr.rel (%p607) target = $region52
      $region51: #{discrete_nll_loss.1} parent=43 // pred_region
        %p610 = scmp.lt.s32.totalorder %s22, 1
        %s611 = scalar_select %p610, %s22, 1
        %p612 = scmp.lt.s32.totalorder %s23, 0
        %s613 = scalar_select %p612, %s23, 0
        %s614 = sadd.s32 %s613, %s611
        %s615 = scalar_lea.vmem %s4, %s614
      $region52: #{discrete_nll_loss.1} parent=43 // pred_fallthru
        _
    $region44: #{discrete_nll_loss.1} parent=5 // pred_fallthru
      _
  $region6: #{discrete_nll_loss.1} parent=0 // loop_footer
    %s15 = sadd.s32 1, %s11
  $region7: #{discrete_nll_loss.1} parent=0 // loop_footer_branch
    %10 = sbr.rel target = $region3
  $region8: #{discrete_nll_loss.1} parent=0 // loop_exit
    _

</llo_original>
